<compile_context>
chip_gen: v5e
topology: v5e:2x2
jax: 0.10.0
libtpu: 0.0.40
codegen_flags: <defaults>
</compile_context>

<pallas_src>
import math

import jax
import jax.numpy as jnp
from jax.experimental import pallas as pl
from jax.experimental.pallas import tpu as pltpu


# ----------------------------- helpers ------------------------------------


def _vmem_capacity_bytes() -> int:
    """Per-core VMEM capacity; conservative 64 MiB fallback (v7x) if query fails."""
    try:
        info = pltpu.get_tpu_info()
        cap = getattr(info, "vmem_capacity_bytes", None)
        if cap:
            return int(cap)
    except Exception:
        pass
    return 64 * 1024 * 1024


def _pick_tile(total: int, preferred: int, multiple: int) -> int:
    """Largest tile <= preferred that is a multiple of `multiple` and divides
    `total`; falls back to the full extent (always a legal block shape)."""
    t = min(preferred, total)
    t -= t % multiple
    while t >= multiple:
        if total % t == 0:
            return t
        t -= multiple
    return total


def _activate(logits, act):
    """Head activation on f32 logits."""
    if act == "softmax":
        m = jnp.max(logits, axis=-1, keepdims=True)          # XLU reduce
        e = jnp.exp(logits - m)                               # EUP
        s = jnp.sum(e, axis=-1, keepdims=True)                # XLU reduce
        return e * pl.reciprocal(s, approx=False)             # EUP recip (VALU-free)
    if act == "sigmoid":
        return jax.nn.sigmoid(logits)
    return logits  # "none"


# ----------------------------- kernels ------------------------------------


def _make_fast_kernel(act):
    """Weight-resident path: grid = (token tiles,). One dot per tile, no K loop."""

    def kernel(x_ref, w_ref, b_ref, o_ref):
        logits = jnp.dot(x_ref[...], w_ref[...],
                         preferred_element_type=jnp.float32)
        logits = logits + b_ref[...].astype(jnp.float32)
        o_ref[...] = _activate(logits, act).astype(o_ref.dtype)

    return kernel


def _make_ktiled_kernel(act):
    """K-reduction path: grid = (token tiles, K tiles). f32 VMEM accumulator;
    bias + activation applied exactly once at the final K step."""

    def kernel(x_ref, w_ref, b_ref, o_ref, acc_ref):
        k = pl.program_id(1)

        @pl.when(k == 0)
        def _init():
            acc_ref[...] = jnp.zeros_like(acc_ref)

        acc_ref[...] += jnp.dot(x_ref[...], w_ref[...],
                                preferred_element_type=jnp.float32)

        @pl.when(k == pl.num_programs(1) - 1)
        def _finalize():
            logits = acc_ref[...] + b_ref[...].astype(jnp.float32)
            o_ref[...] = _activate(logits, act).astype(o_ref.dtype)

    return kernel


# ----------------------------- wrapper ------------------------------------


def transformer_basic_head_forward(x, w, b, *, act="softmax",
                                   tm_preferred=256, tk_preferred=2048,
                                   use_bf16_matmul=False,
                                   force_k_tiled=False):
    """Inference forward of TransformerBasicHead.

    x: (B, dim_in); w: (dim_in, num_classes) (= torch Linear weight transposed);
    b: (num_classes,).  Returns (B, num_classes) with the activation applied.
    """
    assert x.ndim == 2, "TODO(synk): 5-D spatial mean-pool branch not implemented"
    B, K = x.shape
    N = w.shape[1]
    assert w.shape[0] == K and b.shape == (N,)
    out_dtype = x.dtype

    # Optional accuracy/traffic trade-off: bf16 operands, f32 MXU accumulation.
    if use_bf16_matmul and x.dtype == jnp.float32:
        x = x.astype(jnp.bfloat16)
        w = w.astype(jnp.bfloat16)

    # ---- lane-dense class padding (full-width stores, full MXU N tiles) ----
    N_pad = -(-N // 128) * 128
    if N_pad != N:
        w = jnp.pad(w, ((0, 0), (0, N_pad - N)))
        # -1e30 keeps softmax probability of padded classes exactly 0.
        pad_val = -1e30 if act == "softmax" else 0.0
        b = jnp.concatenate([b, jnp.full((N_pad - N,), pad_val, dtype=b.dtype)])
    b2d = b.reshape(1, N_pad)

    x_isz = jnp.dtype(x.dtype).itemsize
    w_isz = jnp.dtype(w.dtype).itemsize
    b_isz = jnp.dtype(b.dtype).itemsize
    o_isz = jnp.dtype(out_dtype).itemsize

    # ---- token tile selection ----
    row_mult = 16 if x.dtype == jnp.bfloat16 else 8
    tm = _pick_tile(B, tm_preferred, row_mult)
    # Guarantee >= 2 token tiles when possible so v7x's second TensorCore is used.
    if B // tm < 2 and B >= 2 * row_mult and B % row_mult == 0:
        half = max(row_mult, (B // 2) // row_mult * row_mult)
        tm = _pick_tile(B, half, row_mult)

    budget = int(0.7 * _vmem_capacity_bytes())
    trans = B * N_pad if act in ("softmax", "sigmoid") else 0
    flops = 2 * B * K * N_pad

    # ---- weight-resident fast path ----
    fast_need = (2 * tm * K * x_isz + 2 * K * N_pad * w_isz
                 + 2 * N_pad * b_isz + 2 * tm * N_pad * o_isz)
    use_fast = (not force_k_tiled) and fast_need <= budget

    if use_fast:
        vmem_limit = min(max(int(1.5 * fast_need), 4 << 20), budget)
        cost = pl.CostEstimate(
            flops=flops, transcendentals=trans,
            bytes_accessed=(B * K * x_isz + K * N_pad * w_isz
                            + N_pad * b_isz + B * N_pad * o_isz))
        out = pl.pallas_call(
            _make_fast_kernel(act),
            out_shape=jax.ShapeDtypeStruct((B, N_pad), out_dtype),
            grid_spec=pltpu.PrefetchScalarGridSpec(
                num_scalar_prefetch=0,
                grid=(B // tm,),
                in_specs=[
                    pl.BlockSpec((tm, K), lambda i: (i, 0)),       # x token tile
                    pl.BlockSpec((K, N_pad), lambda i: (0, 0)),    # resident weight
                    pl.BlockSpec((1, N_pad), lambda i: (0, 0)),    # bias (resident)
                ],
                out_specs=pl.BlockSpec((tm, N_pad), lambda i: (i, 0)),
            ),
            compiler_params=pltpu.CompilerParams(
                dimension_semantics=("parallel",),
                vmem_limit_bytes=vmem_limit),
            cost_estimate=cost,
        )(x, w, b2d)
    else:
        # ---- K-tiled reduction path (weight does not fit VMEM) ----
        tk = _pick_tile(K, tk_preferred, 128)

        def _need(tk_):
            return (2 * tm * tk_ * x_isz + 2 * tk_ * N_pad * w_isz
                    + 2 * N_pad * b_isz + 2 * tm * N_pad * o_isz
                    + tm * N_pad * 4)

        while _need(tk) > budget and tk > 128:
            new_tk = _pick_tile(K, max(128, tk // 2), 128)
            if new_tk == tk:
                break
            tk = new_tk

        vmem_limit = min(max(int(1.5 * _need(tk)), 4 << 20), budget)
        cost = pl.CostEstimate(
            flops=flops, transcendentals=trans,
            # Weight is re-streamed once per token tile under this tiling.
            bytes_accessed=(B * K * x_isz + (B // tm) * K * N_pad * w_isz
                            + N_pad * b_isz + B * N_pad * o_isz))
        out = pl.pallas_call(
            _make_ktiled_kernel(act),
            out_shape=jax.ShapeDtypeStruct((B, N_pad), out_dtype),
            grid_spec=pltpu.PrefetchScalarGridSpec(
                num_scalar_prefetch=0,
                grid=(B // tm, K // tk),
                in_specs=[
                    pl.BlockSpec((tm, tk), lambda i, k: (i, k)),     # x tile
                    pl.BlockSpec((tk, N_pad), lambda i, k: (k, 0)),  # weight K chunk
                    pl.BlockSpec((1, N_pad), lambda i, k: (0, 0)),   # bias
                ],
                out_specs=pl.BlockSpec((tm, N_pad), lambda i, k: (i, 0)),
                scratch_shapes=[pltpu.VMEM((tm, N_pad), jnp.float32)],
            ),
            compiler_params=pltpu.CompilerParams(
                dimension_semantics=("parallel", "arbitrary"),
                vmem_limit_bytes=vmem_limit),
            cost_estimate=cost,
        )(x, w, b2d)

    if N_pad != N:
        out = out[:, :N]
    return out


def _reference_head(x, w, b, act="softmax"):
    logits = jnp.dot(x, w, precision=jax.lax.Precision.HIGHEST) + b
    if act == "softmax":
        return jax.nn.softmax(logits, axis=-1)
    if act == "sigmoid":
        return jax.nn.sigmoid(logits)
    return logits


if __name__ == "__main__":
    # Small shapes consistent with the head: (batch, dim_in) -> (batch, classes).
    # num_classes deliberately NOT a multiple of 128 to exercise the padding path.
    B, DIM_IN, NUM_CLASSES = 16, 256, 100

    key = jax.random.PRNGKey(0)
    kx, kw, kb = jax.random.split(key, 3)

    x = jax.random.normal(kx, (B, DIM_IN), dtype=jnp.float32)
    # torch nn.Linear weight is (out, in); stored transposed here as (in, out).
    w = jax.random.normal(kw, (DIM_IN, NUM_CLASSES), dtype=jnp.float32) / math.sqrt(DIM_IN)
    b = jax.random.normal(kb, (NUM_CLASSES,), dtype=jnp.float32) * 0.5

    y_ref = _reference_head(x, w, b, act="softmax")

    # Weight-resident fast path (the normal case for a classification head).
    y = transformer_basic_head_forward(x, w, b, act="softmax")
    jax.block_until_ready(y)
    assert y.shape == (B, NUM_CLASSES)
    assert jnp.allclose(y, y_ref, atol=1e-5, rtol=1e-4), "fast path mismatch vs reference"
    assert jnp.all(jnp.argmax(y, -1) == jnp.argmax(y_ref, -1)), "argmax mismatch"
    assert jnp.allclose(jnp.sum(y, axis=-1), 1.0, atol=1e-5), "softmax rows must sum to 1"

    # K-tiled reduction path (used when the weight exceeds the VMEM budget).
    y2 = transformer_basic_head_forward(x, w, b, act="softmax",
                                        force_k_tiled=True, tk_preferred=128)
    jax.block_until_ready(y2)
    assert jnp.allclose(y2, y_ref, atol=1e-5, rtol=1e-4), "k-tiled path mismatch vs reference"

    print("KERNEL_OK")
</pallas_src>

<mosaic_0001>
module attributes {stable_mosaic.version = 11 : i64} {
  func.func @kernel(%arg0: i32, %arg1: memref<8x256xf32, #tpu.memory_space<vmem>>, %arg2: memref<256x128xf32, #tpu.memory_space<vmem>>, %arg3: memref<1x128xf32, #tpu.memory_space<vmem>>, %arg4: memref<8x128xf32, #tpu.memory_space<vmem>>) attributes {dimension_semantics = [#tpu.dimension_semantics<parallel>], iteration_bounds = array<i64: 2>, scalar_prefetch = 0 : i64, scratch_operands = 0 : i64, tpu.core_type = #tpu.core_type<tc>, window_params = [{transform_indices = @transform_0, window_bounds = array<i64: 8, 256>}, {pipeline_mode = #tpu.pipeline_mode<synchronous>, transform_indices = @transform_1, window_bounds = array<i64: 256, 128>}, {pipeline_mode = #tpu.pipeline_mode<synchronous>, transform_indices = @transform_2, window_bounds = array<i64: 1, 128>}, {transform_indices = @transform_3, window_bounds = array<i64: 8, 128>}]} {
    %c0 = arith.constant 0 : index
    %c0_0 = arith.constant 0 : index
    %0 = vector.load %arg1[%c0, %c0_0] : memref<8x256xf32, #tpu.memory_space<vmem>>, vector<8x256xf32>
    %c0_1 = arith.constant 0 : index
    %c0_2 = arith.constant 0 : index
    %1 = vector.load %arg2[%c0_1, %c0_2] : memref<256x128xf32, #tpu.memory_space<vmem>>, vector<256x128xf32>
    %cst = arith.constant dense<0.000000e+00> : vector<8x128xf32>
    %2 = tpu.matmul %0, %1, %cst {dimension_numbers = #tpu.dot_dimension_numbers<[1], [0], [0], [1], [0, 0, 1, 1], [], []>} : vector<8x256xf32>, vector<256x128xf32>, vector<8x128xf32> -> vector<8x128xf32>
    %c0_3 = arith.constant 0 : index
    %c0_4 = arith.constant 0 : index
    %3 = vector.load %arg3[%c0_3, %c0_4] : memref<1x128xf32, #tpu.memory_space<vmem>>, vector<1x128xf32>
    %4 = vector.broadcast %3 : vector<1x128xf32> to vector<8x128xf32>
    %5 = arith.addf %2, %4 : vector<8x128xf32>
    %cst_5 = arith.constant dense<0xFF800000> : vector<8xf32>
    %6 = vector.multi_reduction <maximumf>, %5, %cst_5 [1] : vector<8x128xf32> to vector<8xf32>
    %7 = vector.shape_cast %6 : vector<8xf32> to vector<8x1xf32>
    %8 = vector.broadcast %7 : vector<8x1xf32> to vector<8x128xf32>
    %9 = arith.subf %5, %8 : vector<8x128xf32>
    %10 = math.exp %9 : vector<8x128xf32>
    %cst_6 = arith.constant dense<0.000000e+00> : vector<8xf32>
    %11 = vector.multi_reduction <add>, %10, %cst_6 [1] : vector<8x128xf32> to vector<8xf32>
    %12 = vector.shape_cast %11 : vector<8xf32> to vector<8x1xf32>
    %13 = tpu.reciprocal %12 : vector<8x1xf32> -> vector<8x1xf32>
    %14 = vector.broadcast %13 : vector<8x1xf32> to vector<8x128xf32>
    %15 = arith.mulf %10, %14 : vector<8x128xf32>
    %c0_7 = arith.constant 0 : index
    %c0_8 = arith.constant 0 : index
    %16 = vector.load %arg4[%c0_7, %c0_8] : memref<8x128xf32, #tpu.memory_space<vmem>>, vector<8x128xf32>
    tpu.vector_store %arg4[%c0_7, %c0_8], %15 {strides = array<i32>} : memref<8x128xf32, #tpu.memory_space<vmem>>, vector<8x128xf32>,
    return
  }
  func.func @transform_0(%arg0: i32) -> (i32, i32) {
    %c0_i32 = arith.constant 0 : i32
    %c0_i32_0 = arith.constant 0 : i32
    return %arg0, %c0_i32 : i32, i32
  }
  func.func @transform_1(%arg0: i32) -> (i32, i32) {
    %c0_i32 = arith.constant 0 : i32
    %c0_i32_0 = arith.constant 0 : i32
    %c0_i32_1 = arith.constant 0 : i32
    return %c0_i32, %c0_i32_0 : i32, i32
  }
  func.func @transform_2(%arg0: i32) -> (i32, i32) {
    %c0_i32 = arith.constant 0 : i32
    %c0_i32_0 = arith.constant 0 : i32
    %c0_i32_1 = arith.constant 0 : i32
    return %c0_i32, %c0_i32_0 : i32, i32
  }
  func.func @transform_3(%arg0: i32) -> (i32, i32) {
    %c0_i32 = arith.constant 0 : i32
    %c0_i32_0 = arith.constant 0 : i32
    return %arg0, %c0_i32 : i32, i32
  }
}

</mosaic_0001>

<llo_original>
// kernel: tpu_custom_call.1
$region0: #{tpu_custom_call.1}
  #allocation0 [shape = 'u32[]', space=smem, size = 0x4, offset = 0x4, fixed_abs, tag = 'smem constant byte address 0x4 - core index']
  #allocation1 [shape = 'u32[72,128]{1,0:T(1,128)}', space=vmem, size = 0x9000, scoped, tag = 'internal scratch']
  %s0 = inlined_call_operand.hbm [shape: f32[16,256], index: 0, kind: input, shape index: {}]
  %s1 = inlined_call_operand.hbm [shape: f32[256,128], index: 1, kind: input, shape index: {}]
  %s2 = inlined_call_operand.vmem [shape: f32[1,128], index: 2, kind: input, shape index: {}]
  %s3 = inlined_call_operand.hbm [shape: f32[16,128], index: 3, kind: output, shape index: {}]
  %s4 = sld [smem:[#allocation0]]
  $region53: #{tpu_custom_call.1} parent=0
    _
  %s6 = ssub.s32 1, %s4
  %s7 = scalar_select 0, %s6, %s4
  $region1: #{tpu_custom_call.1} parent=0
    #allocation2 [shape = 'u8[16384]{0}', space=vmem, size = 0x4000, scoped, tag = 'input window, operand 0']
    #allocation3 [shape = 's32[2]{0}', space=sflag, size = 0x8, scoped, tag = 'scoped memory for tpu_custom_call.1']
    #allocation4 [shape = 's32[2]{0}', space=sflag, size = 0x8, scoped, tag = 'scoped memory for tpu_custom_call.1']
    #allocation5 [shape = 'u8[131072]{0}', space=vmem, size = 0x20000, scoped, tag = 'input window, operand 1, single buffered']
    #allocation6 [shape = 's32[1]{0}', space=sflag, size = 0x4, scoped, tag = 'scoped memory for tpu_custom_call.1']
    #allocation7 [shape = 'u8[8192]{0}', space=vmem, size = 0x2000, scoped, tag = 'output window, operand 0']
    %8 = vsyncpa [#allocation3], 0
    %s9 = scalar_lea.sflag [#allocation3], 1
    %10 = vsyncpa %s9, 0
    %11 = vsyncpa [#allocation6], 0
    %12 = vsyncpa [#allocation4], 0
    %s13 = scalar_lea.sflag [#allocation4], 1
    %14 = vsyncpa %s13, 0
    loop: start=0, step=1, limit=4
    $region2: #{tpu_custom_call.1} parent=1 // loop_pre_header
      _
    $region3: #{tpu_custom_call.1} parent=1 // loop_header
      %s16 = sphi 0, %s20
      %p17 = scmp.ge.s32.totalorder %s16, 4
      %s26 = sphi 0, %s28
      %s29 = sphi 0, %s26
      %s30 = sphi 0, %s29
      %s46 = sphi 0, %s30
      %s50 = sphi 0, %s50
      %s52 = sphi 0, %s50
      %s53 = sphi 0, %s52
      %s67 = sphi 0, %s53
      %s71 = sphi 0, %s71
      %s73 = sphi 0, %s71
      %s74 = sphi 0, %s73
      %s88 = sphi 0, %s74
      %s94 = sphi 0, %s96
      %s97 = sphi 0, %s94
      %s98 = sphi 0, %s97
      %s114 = sphi 0, %s98
    $region4: #{tpu_custom_call.1} parent=1 // loop_header_branch
      %19 = sbr.rel (%p17) target = $region8
    $region5: #{tpu_custom_call.1} parent=1 // loop_body
      %s21 = ssub.s32 %s16, 1
      %s22 = ssub.s32 %s16, 2
      %s23 = sadd.s32 %s16, 1
      %s24 = ssub.s32 %s16, %s23
      %p25 = scmp.eq.s32.totalorder %s24, 0
      %s27 = sadd.s32 %s26, 1
      %s28 = scalar_select %p25, %s26, %s27
      %p31 = pneg %p25
      %p32 = scmp.eq.s32.totalorder %s16, 1
      %p33 = por %p31, %p32
      %p34 = scmp.ne.s32.totalorder %s26, %s29
      %p35 = scmp.eq.s32.totalorder %s16, 0
      %p36 = por %p34, %p35
      %p37 = scmp.ne.s32.totalorder %s26, %s29
      %p38 = scmp.eq.s32.totalorder %s21, 1
      %p39 = por %p37, %p38
      %p40 = scmp.ne.s32.totalorder %s29, %s30
      %p41 = scmp.eq.s32.totalorder %s21, 0
      %p42 = por %p40, %p41
      %p43 = scmp.ne.s32.totalorder %s29, %s30
      %p44 = scmp.eq.s32.totalorder %s22, 1
      %p45 = por %p43, %p44
      %p47 = scmp.ne.s32.totalorder %s30, %s46
      %p48 = scmp.eq.s32.totalorder %s22, 0
      %p49 = por %p47, %p48
      %s51 = sadd.s32 %s50, 1
      %p54 = scmp.eq.s32.totalorder %s16, 1
      %p55 = scmp.ne.s32.totalorder %s50, %s52
      %p56 = scmp.eq.s32.totalorder %s16, 0
      %p57 = por %p55, %p56
      %p58 = scmp.ne.s32.totalorder %s50, %s52
      %p59 = scmp.eq.s32.totalorder %s21, 1
      %p60 = por %p58, %p59
      %p61 = scmp.ne.s32.totalorder %s52, %s53
      %p62 = scmp.eq.s32.totalorder %s21, 0
      %p63 = por %p61, %p62
      %p64 = scmp.ne.s32.totalorder %s52, %s53
      %p65 = scmp.eq.s32.totalorder %s22, 1
      %p66 = por %p64, %p65
      %p68 = scmp.ne.s32.totalorder %s53, %s67
      %p69 = scmp.eq.s32.totalorder %s22, 0
      %p70 = por %p68, %p69
      %s72 = sadd.s32 %s71, 1
      %p75 = scmp.eq.s32.totalorder %s16, 1
      %p76 = scmp.ne.s32.totalorder %s71, %s73
      %p77 = scmp.eq.s32.totalorder %s16, 0
      %p78 = por %p76, %p77
      %p79 = scmp.ne.s32.totalorder %s71, %s73
      %p80 = scmp.eq.s32.totalorder %s21, 1
      %p81 = por %p79, %p80
      %p82 = scmp.ne.s32.totalorder %s73, %s74
      %p83 = scmp.eq.s32.totalorder %s21, 0
      %p84 = por %p82, %p83
      %p85 = scmp.ne.s32.totalorder %s73, %s74
      %p86 = scmp.eq.s32.totalorder %s22, 1
      %p87 = por %p85, %p86
      %p89 = scmp.ne.s32.totalorder %s74, %s88
      %p90 = scmp.eq.s32.totalorder %s22, 0
      %p91 = por %p89, %p90
      %s92 = ssub.s32 %s16, %s23
      %p93 = scmp.eq.s32.totalorder %s92, 0
      %s95 = sadd.s32 %s94, 1
      %s96 = scalar_select %p93, %s94, %s95
      %p99 = pneg %p93
      %p100 = scmp.eq.s32.totalorder %s16, 1
      %p101 = por %p99, %p100
      %p102 = scmp.ne.s32.totalorder %s94, %s97
      %p103 = scmp.eq.s32.totalorder %s16, 0
      %p104 = por %p102, %p103
      %p105 = scmp.ne.s32.totalorder %s94, %s97
      %p106 = scmp.eq.s32.totalorder %s21, 1
      %p107 = por %p105, %p106
      %p108 = scmp.ne.s32.totalorder %s97, %s98
      %p109 = scmp.eq.s32.totalorder %s21, 0
      %p110 = por %p108, %p109
      %p111 = scmp.ne.s32.totalorder %s97, %s98
      %p112 = scmp.eq.s32.totalorder %s22, 1
      %p113 = por %p111, %p112
      %p115 = scmp.ne.s32.totalorder %s98, %s114
      %p116 = scmp.eq.s32.totalorder %s22, 0
      %p117 = por %p115, %p116
      %p118 = scmp.le.s32.totalorder 1, %s16
      %p119 = scmp.lt.s32.totalorder %s16, 3
      %p120 = pnand %p118, %p119
      %p121 = pneg %p120
      // Predicated region
      $region9: #{tpu_custom_call.1} parent=5 // pred_check
        _
      $region10: #{tpu_custom_call.1} parent=5 // pred_check_branch
        %123 = sbr.rel (%p120) target = $region12
      $region11: #{tpu_custom_call.1} parent=5 // pred_region
        %s124 = ssub.s32 %s16, 1
        // Predicated region
        $region13: #{tpu_custom_call.1} parent=11 // pred_check
          %p125 = pneg %p63
        $region14: #{tpu_custom_call.1} parent=11 // pred_check_branch
          %127 = sbr.rel (%p125) target = $region16
        $region15: #{tpu_custom_call.1} parent=11 // pred_region
          %129 = vsyncadd [#allocation6], 0
          %s130 = sshll.u32 %s1, 4
          %s131 = int_to_ptr.hbm [resolvable:$true] %s130
          %s132 = sshll.u32 [#allocation5], 4
          %s133 = int_to_ptr.vmem [resolvable:$true] %s132
          %138 = dma.hbm_to_vmem [thread:$0]  %s131, 4096, %s133, [#allocation6], 128, 128, 8
        $region16: #{tpu_custom_call.1} parent=11 // pred_fallthru
          _
        // Predicated region
        $region17: #{tpu_custom_call.1} parent=11 // pred_check
          %p139 = pneg %p84
        $region18: #{tpu_custom_call.1} parent=11 // pred_check_branch
          %141 = sbr.rel (%p139) target = $region20
        $region19: #{tpu_custom_call.1} parent=11 // pred_region
          _
        $region20: #{tpu_custom_call.1} parent=11 // pred_fallthru
          _
      $region12: #{tpu_custom_call.1} parent=5 // pred_fallthru
        _
      %p142 = scmp.lt.s32.totalorder %s16, 2
      // Predicated region
      $region21: #{tpu_custom_call.1} parent=5 // pred_check
        %p143 = pneg %p142
      $region22: #{tpu_custom_call.1} parent=5 // pred_check_branch
        %145 = sbr.rel (%p143) target = $region24
      $region23: #{tpu_custom_call.1} parent=5 // pred_region
        // Predicated region
        $region25: #{tpu_custom_call.1} parent=23 // pred_check
          %p146 = pneg %p36
        $region26: #{tpu_custom_call.1} parent=23 // pred_check_branch
          %148 = sbr.rel (%p146) target = $region28
        $region27: #{tpu_custom_call.1} parent=23 // pred_region
          %s149 = sand.u32 %s26, 1
          %s150 = scalar_lea.sflag [#allocation3], %s149
          %s151 = sand.u32 %s26, 1
          %s152 = smul.addr %s151, 16
          %s153 = scalar_lea.vmem [#allocation2], %s152
          %155 = vsyncadd %s150, 0
          %s156 = smul.addr %s16, 2
          %s157 = smul.addr %s156, 8
          %s158 = scalar_lea.hbm %s0, %s157
          %s160 = sshll.u32 %s158, 4
          %s161 = int_to_ptr.hbm [resolvable:$true] %s160
          %s162 = sshll.u32 %s153, 4
          %s163 = int_to_ptr.vmem [resolvable:$true] %s162
          %165 = dma.hbm_to_vmem [thread:$0]  %s161, 256, %s163, %s150
        $region28: #{tpu_custom_call.1} parent=23 // pred_fallthru
          _
      $region24: #{tpu_custom_call.1} parent=5 // pred_fallthru
        _
      %p166 = scmp.le.s32.totalorder 1, %s16
      %p167 = scmp.lt.s32.totalorder %s16, 3
      %p168 = pnand %p166, %p167
      %p169 = pneg %p168
      // Predicated region
      $region29: #{tpu_custom_call.1} parent=5 // pred_check
        _
      $region30: #{tpu_custom_call.1} parent=5 // pred_check_branch
        %171 = sbr.rel (%p168) target = $region32
      $region31: #{tpu_custom_call.1} parent=5 // pred_region
        %s172 = ssub.s32 %s16, 1
        %s173 = sand.u32 %s29, 1
        %s174 = scalar_lea.sflag [#allocation3], %s173
        %s175 = sand.u32 %s29, 1
        %s176 = smul.addr %s175, 16
        %s177 = scalar_lea.vmem [#allocation2], %s176
        // Predicated region
        $region33: #{tpu_custom_call.1} parent=31 // pred_check
          %p178 = pneg %p42
        $region34: #{tpu_custom_call.1} parent=31 // pred_check_branch
          %180 = sbr.rel (%p178) target = $region36
        $region35: #{tpu_custom_call.1} parent=31 // pred_region
          %182 = dma.done %s174, 256
        $region36: #{tpu_custom_call.1} parent=31 // pred_fallthru
          _
        // Predicated region
        $region37: #{tpu_custom_call.1} parent=31 // pred_check
          %p183 = pneg %p63
        $region38: #{tpu_custom_call.1} parent=31 // pred_check_branch
          %185 = sbr.rel (%p183) target = $region40
        $region39: #{tpu_custom_call.1} parent=31 // pred_region
          %187 = dma.done [#allocation6], 4096
        $region40: #{tpu_custom_call.1} parent=31 // pred_fallthru
          _
        %s188 = sand.u32 %s29, 1
        %s189 = scalar_lea.sflag [#allocation3], %s188
        %s190 = sand.u32 %s29, 1
        %s191 = smul.addr %s190, 16
        %s192 = scalar_lea.vmem [#allocation2], %s191
        %p193 = pneg %p42
        %p194 = pneg %p39
        %p195 = pneg %p63
        %p196 = pneg %p60
        %p197 = pneg %p84
        %p198 = pneg %p81
        %p199 = pneg %p110
        %p200 = pneg %p107
        %s201 = sand.u32 %s97, 1
        %s202 = scalar_lea.sflag [#allocation4], %s201
        %s203 = sand.u32 %s97, 1
        %s204 = smul.addr %s203, 8
        %s205 = scalar_lea.vmem [#allocation7], %s204
        %v206 = vld [vmem:[%s177] sm:$0xff]
        %v207 = vld [vmem:[%s177 + $0x8] sm:$0xff]
        %v208 = vld [vmem:[#allocation5] sm:$0xff]
        %v209 = vld [vmem:[#allocation5 + $0x8] sm:$0xff]
        %v210 = vld [vmem:[#allocation5 + $0x10] sm:$0xff]
        %v211 = vld [vmem:[#allocation5 + $0x18] sm:$0xff]
        %v212 = vld [vmem:[#allocation5 + $0x20] sm:$0xff]
        %v213 = vld [vmem:[#allocation5 + $0x28] sm:$0xff]
        %v214 = vld [vmem:[#allocation5 + $0x30] sm:$0xff]
        %v215 = vld [vmem:[#allocation5 + $0x38] sm:$0xff]
        %v216 = vld [vmem:[#allocation5 + $0x40] sm:$0xff]
        %v217 = vld [vmem:[#allocation5 + $0x48] sm:$0xff]
        %v218 = vld [vmem:[#allocation5 + $0x50] sm:$0xff]
        %v219 = vld [vmem:[#allocation5 + $0x58] sm:$0xff]
        %v220 = vld [vmem:[#allocation5 + $0x60] sm:$0xff]
        %v221 = vld [vmem:[#allocation5 + $0x68] sm:$0xff]
        %v222 = vld [vmem:[#allocation5 + $0x70] sm:$0xff]
        %v223 = vld [vmem:[#allocation5 + $0x78] sm:$0xff]
        %v224 = vld [vmem:[#allocation5 + $0x80] sm:$0xff]
        %v225 = vld [vmem:[#allocation5 + $0x88] sm:$0xff]
        %v226 = vld [vmem:[#allocation5 + $0x90] sm:$0xff]
        %v227 = vld [vmem:[#allocation5 + $0x98] sm:$0xff]
        %v228 = vld [vmem:[#allocation5 + $0xa0] sm:$0xff]
        %v229 = vld [vmem:[#allocation5 + $0xa8] sm:$0xff]
        %v230 = vld [vmem:[#allocation5 + $0xb0] sm:$0xff]
        %v231 = vld [vmem:[#allocation5 + $0xb8] sm:$0xff]
        %v232 = vld [vmem:[#allocation5 + $0xc0] sm:$0xff]
        %v233 = vld [vmem:[#allocation5 + $0xc8] sm:$0xff]
        %v234 = vld [vmem:[#allocation5 + $0xd0] sm:$0xff]
        %v235 = vld [vmem:[#allocation5 + $0xd8] sm:$0xff]
        %v236 = vld [vmem:[#allocation5 + $0xe0] sm:$0xff]
        %v237 = vld [vmem:[#allocation5 + $0xe8] sm:$0xff]
        %v238 = vld [vmem:[#allocation5 + $0xf0] sm:$0xff]
        %v239 = vld [vmem:[#allocation5 + $0xf8] sm:$0xff]
        %v240 = vld [vmem:[%s2] sm:$0x1]
        %v242 = vperm.slane %v240, 0
        %244 = vmatpush.msra.mxu0 %v223
        %245 = vmatpush.msra.mxu0 %v222
        %246 = vmatpush.msra.mxu0 %v221
        %247 = vmatpush.msra.mxu0 %v220
        %248 = vmatpush.msra.mxu0 %v219
        %249 = vmatpush.msra.mxu0 %v218
        %250 = vmatpush.msra.mxu0 %v217
        %251 = vmatpush.msra.mxu0 %v216
        %252 = vmatpush.msra.mxu0 %v215
        %253 = vmatpush.msra.mxu0 %v214
        %254 = vmatpush.msra.mxu0 %v213
        %255 = vmatpush.msra.mxu0 %v212
        %256 = vmatpush.msra.mxu0 %v211
        %257 = vmatpush.msra.mxu0 %v210
        %258 = vmatpush.msra.mxu0 %v209
        %259 = vmatpush.msra.mxu0 %v208
        %260 = vmatmul.f32.gmra.mxu0 %v206
        %v261 = vpop.f32.mrf.mxu0
        %v262 = vadd.f32 %v242, %v261
        %263 = vdwg.mxu0
        %264 = vmatpush.msra.mxu0 %v239
        %265 = vmatpush.msra.mxu0 %v238
        %266 = vmatpush.msra.mxu0 %v237
        %267 = vmatpush.msra.mxu0 %v236
        %268 = vmatpush.msra.mxu0 %v235
        %269 = vmatpush.msra.mxu0 %v234
        %270 = vmatpush.msra.mxu0 %v233
        %271 = vmatpush.msra.mxu0 %v232
        %272 = vmatpush.msra.mxu0 %v231
        %273 = vmatpush.msra.mxu0 %v230
        %274 = vmatpush.msra.mxu0 %v229
        %275 = vmatpush.msra.mxu0 %v228
        %276 = vmatpush.msra.mxu0 %v227
        %277 = vmatpush.msra.mxu0 %v226
        %278 = vmatpush.msra.mxu0 %v225
        %279 = vmatpush.msra.mxu0 %v224
        %280 = vmatmul.f32.gmra.mxu0 %v207
        %v281 = vpop.f32.mrf.mxu0
        %v282 = vadd.f32 %v262, %v281
        %283 = vdwg.mxu0
        %284 = vmax.xlane.f32.xlu0 %v282
        %v285 = vpop.xlane.xlu0 %284
        %v286 = vsub.f32 %v282, %v285
        %v287 = vmul.f32 %v286, 1.442695
        %v288 = vpow.pop %v287
        %289 = vadd.xlane.f32.xlu0 %v288
        %v290 = vpop.xlane.xlu0 %289
        %v291 = vrcp.pop %v290
        %v292 = vmul.f32 %v290, %v291
        %v293 = vsub.f32 1.0, %v292
        %v294 = vmul.f32 %v291, %v293
        %v295 = vadd.f32 %v291, %v294
        %vm296 = vweird.f32 %v290
        %vm297 = vweird.f32 %v291
        %vm298 = vmor %vm296, %vm297
        %v299 = vsel %vm298, %v291, %v295
        %v300 = vand.u32 2147483647, %v290
        %vm301 = vcmp.eq.f32.partialorder %v300, 8.507059e+37
        %v302 = vand.u32 %v290, 2147483648
        %v303 = vor.u32 1.1754944e-38, %v302
        %v304 = vsel %vm301, %v303, %v299
        %v305 = vmul.f32 %v288, %v304
        %306 = vst [vmem:[%s205] sm:$0xff] %v305
        %s307 = sand.u32 %s97, 1
        %s308 = scalar_lea.sflag [#allocation4], %s307
        %s309 = sand.u32 %s97, 1
        %s310 = smul.addr %s309, 8
        %s311 = scalar_lea.vmem [#allocation7], %s310
        // Predicated region
        $region41: #{tpu_custom_call.1} parent=31 // pred_check
          %p312 = pneg %p107
        $region42: #{tpu_custom_call.1} parent=31 // pred_check_branch
          %314 = sbr.rel (%p312) target = $region44
        $region43: #{tpu_custom_call.1} parent=31 // pred_region
          %316 = vsyncadd %s308, 0
          %s317 = smul.addr %s21, 8
          %s318 = scalar_lea.hbm %s3, %s317
          %s320 = sshll.u32 %s311, 4
          %s321 = int_to_ptr.vmem [resolvable:$true] %s320
          %s322 = sshll.u32 %s318, 4
          %s323 = int_to_ptr.hbm [resolvable:$true] %s322
          %325 = dma.vmem_to_hbm [thread:$0]  %s321, 128, %s323, %s308
        $region44: #{tpu_custom_call.1} parent=31 // pred_fallthru
          _
      $region32: #{tpu_custom_call.1} parent=5 // pred_fallthru
        _
      %p326 = scmp.le.s32.totalorder 2, %s16
      // Predicated region
      $region45: #{tpu_custom_call.1} parent=5 // pred_check
        %p327 = pneg %p326
      $region46: #{tpu_custom_call.1} parent=5 // pred_check_branch
        %329 = sbr.rel (%p327) target = $region48
      $region47: #{tpu_custom_call.1} parent=5 // pred_region
        %s330 = ssub.s32 %s16, 2
        // Predicated region
        $region49: #{tpu_custom_call.1} parent=47 // pred_check
          %p331 = pneg %p113
        $region50: #{tpu_custom_call.1} parent=47 // pred_check_branch
          %333 = sbr.rel (%p331) target = $region52
        $region51: #{tpu_custom_call.1} parent=47 // pred_region
          %s334 = sand.u32 %s98, 1
          %s335 = scalar_lea.sflag [#allocation4], %s334
          %s336 = sand.u32 %s98, 1
          %s337 = smul.addr %s336, 8
          %s338 = scalar_lea.vmem [#allocation7], %s337
          %340 = dma.done %s335, 128
        $region52: #{tpu_custom_call.1} parent=47 // pred_fallthru
          _
      $region48: #{tpu_custom_call.1} parent=5 // pred_fallthru
        _
    $region6: #{tpu_custom_call.1} parent=1 // loop_footer
      %s20 = sadd.s32 1, %s16
    $region7: #{tpu_custom_call.1} parent=1 // loop_footer_branch
      %15 = sbr.rel target = $region3
    $region8: #{tpu_custom_call.1} parent=1 // loop_exit
      _
    %341 = vsyncpa [#allocation3], 1
    %s342 = scalar_lea.sflag [#allocation3], 1
    %343 = vsyncpa %s342, 1
    %344 = vsyncpa [#allocation6], 1
    %345 = vsyncpa [#allocation4], 1
    %s346 = scalar_lea.sflag [#allocation4], 1
    %347 = vsyncpa %s346, 1

</llo_original>
